<compile_context>
chip_gen: v6e
topology: v6e:2x2x1
jax: 0.10.0
libtpu: 0.0.40
codegen_flags: <defaults>
</compile_context>

<pallas_src>
import functools

import jax
import jax.numpy as jnp
from jax.experimental import pallas as pl
from jax.experimental.pallas import tpu as pltpu


def mlp_recognizer_kernel(norm, x_ref, wh_ref, whead_ref, m_ref, out_ref):
    B = x_ref.shape[0]
    hdim = whead_ref.shape[0] - 1          # last row of the slab is the bias
    two_x = m_ref.shape[-1]
    xdim = two_x // 2

    # Hidden layer: x_aug carries a trailing ones column, so the bias row that
    # was folded into wh_ref comes along for free -> single MXU push.
    h = jnp.tanh(jnp.dot(x_ref[...], wh_ref[...],
                         preferred_element_type=jnp.float32))          # (B, hdim)

    # Fused mu/logvar head: static row slices of the ref (bias row is
    # sublane-aligned since hdim % 8 == 0) -> single MXU push + one VPU add.
    head = (jnp.dot(h, whead_ref[:hdim, :],
                    preferred_element_type=jnp.float32)
            + whead_ref[hdim:, :])                                     # (B, 2*xdim)

    # Running-mean EMA, done entirely in the padded (.., 2*xdim) lane space with
    # a VPU lane mask — no lane concat, no zeros materialization.
    col = jax.lax.broadcasted_iota(jnp.int32, (B, two_x), 1)
    mu_mask = col < xdim                                               # mu lanes only
    old_m = m_ref[...]                                                 # (1, 2*xdim), hi lanes 0
    diff = jnp.where(mu_mask, head - old_m, 0.0)                       # logvar lanes -> 0
    new_m = 0.9 * old_m + 0.1 * jnp.mean(diff, axis=0, keepdims=True)  # hi lanes stay 0

    # Output slab: rows [0:B] = [mu | logvar] (mu corrected iff norm),
    # row B = [new_m | 0]. new_m's logvar lanes are exactly 0, so a plain
    # subtraction only touches the mu half.
    body = head - new_m if norm else head
    out_ref[:B, :] = body
    out_ref[B:, :] = new_m


def recognizer_forward(y, u, mu0, logvar0, fused, running_m, *, norm=True):
    """MLPRecognizer forward. Returns (mu, logvar, new_running_m)."""
    B = y.shape[0]
    xdim = mu0.shape[-1]
    din = y.shape[-1] + u.shape[-1] + 2 * xdim
    hdim = fused["wh_full"].shape[-1]

    # Cheap wrapper-side packing (per review: far cheaper than extra operands).
    ones = jnp.ones((B, 1), jnp.float32)
    x_aug = jnp.concatenate([y, u, mu0, logvar0, ones], axis=-1)       # (B, din+1)
    m_pad = jnp.concatenate([running_m, jnp.zeros_like(running_m)],
                            axis=-1)                                   # (1, 2*xdim)

    vmem = pl.BlockSpec(memory_space=pltpu.MemorySpace.VMEM)
    kernel = functools.partial(mlp_recognizer_kernel, norm)

    # Advisory cost so XLA does not treat the (tiny) custom call as opaque.
    flops = 2 * B * ((din + 1) * hdim + hdim * 2 * xdim)
    bytes_accessed = 4 * (
        B * (din + 1)                    # activation slab in
        + (din + 1) * hdim               # hidden weight slab
        + (hdim + 1) * 2 * xdim          # head weight slab
        + 2 * xdim                       # padded running mean in
        + (B + 1) * 2 * xdim             # output slab
    )
    cost = pl.CostEstimate(flops=flops, transcendentals=B * hdim,
                           bytes_accessed=bytes_accessed)

    out = pl.pallas_call(
        kernel,
        out_shape=jax.ShapeDtypeStruct((B + 1, 2 * xdim), jnp.float32),
        in_specs=[vmem, vmem, vmem, vmem],
        out_specs=vmem,
        cost_estimate=cost,
    )(x_aug, fused["wh_full"], fused["whead_full"], m_pad)

    mu = out[:B, :xdim]
    logvar = out[:B, xdim:]
    new_m = out[B:B + 1, :xdim]
    return mu, logvar, new_m


def init_params(key, ydim, udim, xdim, hdim):
    """Deterministic init mimicking nn.Linear (uniform +/- 1/sqrt(fan_in)).

    Weights are stored PRE-TRANSPOSED as (in_features, out_features) so the
    forward computes `x @ W + b` (equivalent to torch's x @ W.T + b).
    """
    din = ydim + udim + 2 * xdim
    ks = jax.random.split(key, 6)

    def uni(k, shape, fan_in):
        bound = 1.0 / jnp.sqrt(jnp.float32(fan_in))
        return jax.random.uniform(k, shape, jnp.float32, -bound, bound)

    return {
        "wh":  uni(ks[0], (din, hdim), din),    # hidden: Linear(din -> hdim)
        "bh":  uni(ks[1], (1, hdim), din),
        "wmu": uni(ks[2], (hdim, xdim), hdim),  # mu:     Linear(hdim -> xdim)
        "bmu": uni(ks[3], (1, xdim), hdim),
        "wlv": uni(ks[4], (hdim, xdim), hdim),  # logvar: Linear(hdim -> xdim)
        "blv": uni(ks[5], (1, xdim), hdim),
    }


def fuse_params(params):
    """One-time (outside the hot path) re-layout into two weight slabs."""
    wh_full = jnp.concatenate([params["wh"], params["bh"]], axis=0)     # (din+1, hdim)
    whead = jnp.concatenate([params["wmu"], params["wlv"]], axis=-1)    # (hdim, 2*xdim)
    bhead = jnp.concatenate([params["bmu"], params["blv"]], axis=-1)    # (1, 2*xdim)
    whead_full = jnp.concatenate([whead, bhead], axis=0)                # (hdim+1, 2*xdim)
    return {"wh_full": wh_full, "whead_full": whead_full}


def reference_forward(y, u, mu0, logvar0, params, running_m, *, norm=True):
    """Pure-JAX reference of the same forward (correctness check)."""
    x = jnp.concatenate([y, u, mu0, logvar0], axis=-1)
    h = jnp.tanh(x @ params["wh"] + params["bh"])
    mu_raw = h @ params["wmu"] + params["bmu"]
    logvar = h @ params["wlv"] + params["blv"]
    new_m = 0.9 * running_m + 0.1 * jnp.mean(mu_raw - running_m, axis=0, keepdims=True)
    mu = mu_raw - new_m if norm else mu_raw
    return mu, logvar, new_m


if __name__ == "__main__":
    # config: xdim=4, ydim=8, udim=2, hdim=32, batch_norm=True; batch=8
    xdim, ydim, udim, hdim, batch = 4, 8, 2, 32, 8

    key = jax.random.PRNGKey(0)
    kp, ky, ku, km, kl = jax.random.split(key, 5)

    params = init_params(kp, ydim, udim, xdim, hdim)
    fused = fuse_params(params)
    fused = jax.tree_util.tree_map(jax.block_until_ready, fused)  # one-time setup

    y = jax.random.normal(ky, (batch, ydim), jnp.float32)
    u = jax.random.normal(ku, (batch, udim), jnp.float32)
    mu0 = jax.random.normal(km, (batch, xdim), jnp.float32)
    logvar0 = jax.random.normal(kl, (batch, xdim), jnp.float32)
    running_m = jnp.zeros((1, xdim), jnp.float32)  # Recognizer.running_m init

    mu, logvar, new_m = recognizer_forward(y, u, mu0, logvar0, fused,
                                           running_m, norm=True)
    jax.block_until_ready((mu, logvar, new_m))

    mu_r, logvar_r, new_m_r = reference_forward(y, u, mu0, logvar0, params,
                                                running_m, norm=True)
    assert jnp.allclose(mu, mu_r, atol=1e-5), "mu mismatch"
    assert jnp.allclose(logvar, logvar_r, atol=1e-5), "logvar mismatch"
    assert jnp.allclose(new_m, new_m_r, atol=1e-5), "running mean mismatch"

    print("KERNEL_OK")
</pallas_src>

<mosaic_0001>
module attributes {stable_mosaic.version = 11 : i64} {
  func.func @mlp_recognizer_kernel(%arg0: memref<8x19xf32, #tpu.memory_space<vmem>>, %arg1: memref<19x32xf32, #tpu.memory_space<vmem>>, %arg2: memref<33x8xf32, #tpu.memory_space<vmem>>, %arg3: memref<1x8xf32, #tpu.memory_space<vmem>>, %arg4: memref<9x8xf32, #tpu.memory_space<vmem>>) attributes {dimension_semantics = [], scalar_prefetch = 0 : i64, scratch_operands = 0 : i64, tpu.core_type = #tpu.core_type<tc>} {
    %c0 = arith.constant 0 : index
    %c0_0 = arith.constant 0 : index
    %0 = vector.load %arg0[%c0, %c0_0] : memref<8x19xf32, #tpu.memory_space<vmem>>, vector<8x19xf32>
    %c0_1 = arith.constant 0 : index
    %c0_2 = arith.constant 0 : index
    %1 = vector.load %arg1[%c0_1, %c0_2] : memref<19x32xf32, #tpu.memory_space<vmem>>, vector<19x32xf32>
    %cst = arith.constant dense<0.000000e+00> : vector<8x32xf32>
    %2 = tpu.matmul %0, %1, %cst {dimension_numbers = #tpu.dot_dimension_numbers<[1], [0], [0], [1], [0, 0, 1, 1], [], []>} : vector<8x19xf32>, vector<19x32xf32>, vector<8x32xf32> -> vector<8x32xf32>
    %3 = math.tanh %2 : vector<8x32xf32>
    %c0_3 = arith.constant 0 : index
    %c0_4 = arith.constant 0 : index
    %4 = vector.load %arg2[%c0_3, %c0_4] : memref<33x8xf32, #tpu.memory_space<vmem>>, vector<32x8xf32>
    %cst_5 = arith.constant dense<0.000000e+00> : vector<8x8xf32>
    %5 = tpu.matmul %3, %4, %cst_5 {dimension_numbers = #tpu.dot_dimension_numbers<[1], [0], [0], [1], [0, 0, 1, 1], [], []>} : vector<8x32xf32>, vector<32x8xf32>, vector<8x8xf32> -> vector<8x8xf32>
    %c32 = arith.constant 32 : index
    %c0_6 = arith.constant 0 : index
    %6 = vector.load %arg2[%c32, %c0_6] : memref<33x8xf32, #tpu.memory_space<vmem>>, vector<1x8xf32>
    %7 = vector.broadcast %6 : vector<1x8xf32> to vector<8x8xf32>
    %8 = arith.addf %5, %7 : vector<8x8xf32>
    %9 = tpu.iota {dimensions = array<i32: 1>} : vector<8x8xi32>
    %c4_i32 = arith.constant 4 : i32
    %10 = vector.broadcast %c4_i32 : i32 to vector<8x8xi32>
    %11 = arith.cmpi slt, %9, %10 : vector<8x8xi32>
    %c0_7 = arith.constant 0 : index
    %c0_8 = arith.constant 0 : index
    %12 = vector.load %arg3[%c0_7, %c0_8] : memref<1x8xf32, #tpu.memory_space<vmem>>, vector<1x8xf32>
    %13 = vector.broadcast %12 : vector<1x8xf32> to vector<8x8xf32>
    %14 = arith.subf %8, %13 : vector<8x8xf32>
    %cst_9 = arith.constant 0.000000e+00 : f32
    %15 = vector.broadcast %cst_9 : f32 to vector<8x8xf32>
    %16 = arith.select %11, %14, %15 : vector<8x8xi1>, vector<8x8xf32>
    %cst_10 = arith.constant 0.899999976 : f32
    %17 = vector.broadcast %cst_10 : f32 to vector<1x8xf32>
    %18 = arith.mulf %17, %12 : vector<1x8xf32>
    %cst_11 = arith.constant dense<0.000000e+00> : vector<8xf32>
    %19 = vector.multi_reduction <add>, %16, %cst_11 [0] : vector<8x8xf32> to vector<8xf32>
    %20 = vector.shape_cast %19 : vector<8xf32> to vector<1x8xf32>
    %cst_12 = arith.constant 8.000000e+00 : f32
    %21 = vector.broadcast %cst_12 : f32 to vector<1x8xf32>
    %22 = arith.divf %20, %21 : vector<1x8xf32>
    %cst_13 = arith.constant 1.000000e-01 : f32
    %23 = vector.broadcast %cst_13 : f32 to vector<1x8xf32>
    %24 = arith.mulf %23, %22 : vector<1x8xf32>
    %25 = arith.addf %18, %24 : vector<1x8xf32>
    %26 = vector.broadcast %25 : vector<1x8xf32> to vector<8x8xf32>
    %27 = arith.subf %8, %26 : vector<8x8xf32>
    %c0_14 = arith.constant 0 : index
    %c0_15 = arith.constant 0 : index
    %28 = vector.load %arg4[%c0_14, %c0_15] : memref<9x8xf32, #tpu.memory_space<vmem>>, vector<8x8xf32>
    tpu.vector_store %arg4[%c0_14, %c0_15], %27 {strides = array<i32>} : memref<9x8xf32, #tpu.memory_space<vmem>>, vector<8x8xf32>,
    %c8 = arith.constant 8 : index
    %c0_16 = arith.constant 0 : index
    %29 = vector.load %arg4[%c8, %c0_16] : memref<9x8xf32, #tpu.memory_space<vmem>>, vector<1x8xf32>
    tpu.vector_store %arg4[%c8, %c0_16], %25 {strides = array<i32>} : memref<9x8xf32, #tpu.memory_space<vmem>>, vector<1x8xf32>,
    return
  }
}

</mosaic_0001>

<llo_original>
// kernel: tpu_custom_call.1
$region0: #{tpu_custom_call.1}
  #allocation0 [shape = 'u32[]', space=smem, size = 0x4, offset = 0x4, fixed_abs, tag = 'smem constant byte address 0x4 - core index']
  #allocation1 [shape = 'u32[144,128]{1,0:T(1,128)}', space=vmem, size = 0x12000, scoped, tag = 'internal scratch']
  %s0 = inlined_call_operand.vmem [shape: f32[8,19], index: 0, kind: input, shape index: {}]
  %s1 = inlined_call_operand.vmem [shape: f32[19,32], index: 1, kind: input, shape index: {}]
  %s2 = inlined_call_operand.vmem [shape: f32[33,8], index: 2, kind: input, shape index: {}]
  %s3 = inlined_call_operand.vmem [shape: f32[1,8], index: 3, kind: input, shape index: {}]
  %s4 = inlined_call_operand.vmem [shape: f32[9,8], index: 4, kind: output, shape index: {}]
  %s5 = sld [smem:[#allocation0]]
  $region26: #{tpu_custom_call.1} parent=0
    _
  %s7 = ssub.s32 1, %s5
  %s8 = scalar_select 0, %s7, %s5
  // Predicated region
  $region2: #{tpu_custom_call.1} parent=0 // pred_check
    _
  $region3: #{tpu_custom_call.1} parent=0 // pred_check_branch
    %10 = sbr.rel (0) target = $region5
  $region4: #{tpu_custom_call.1} parent=0 // pred_region
    _
  $region5: #{tpu_custom_call.1} parent=0 // pred_fallthru
    _
  // Predicated region
  $region6: #{tpu_custom_call.1} parent=0 // pred_check
    _
  $region7: #{tpu_custom_call.1} parent=0 // pred_check_branch
    %12 = sbr.rel (0) target = $region9
  $region8: #{tpu_custom_call.1} parent=0 // pred_region
    _
  $region9: #{tpu_custom_call.1} parent=0 // pred_fallthru
    _
  // Predicated region
  $region10: #{tpu_custom_call.1} parent=0 // pred_check
    _
  $region11: #{tpu_custom_call.1} parent=0 // pred_check_branch
    %14 = sbr.rel (0) target = $region13
  $region12: #{tpu_custom_call.1} parent=0 // pred_region
    _
  $region13: #{tpu_custom_call.1} parent=0 // pred_fallthru
    _
  // Predicated region
  $region14: #{tpu_custom_call.1} parent=0 // pred_check
    _
  $region15: #{tpu_custom_call.1} parent=0 // pred_check_branch
    %16 = sbr.rel (0) target = $region17
  $region16: #{tpu_custom_call.1} parent=0 // pred_region
    _
  $region17: #{tpu_custom_call.1} parent=0 // pred_fallthru
    _
  %v17 = vld [vmem:[%s0] sm:$0xff]
  %v18 = vld [vmem:[%s1] sm:$0xff]
  %v19 = vld [vmem:[%s1 + $0x8] sm:$0xff]
  %v20 = vld [vmem:[%s1 + $0x10] sm:$0x7]
  %vm21 = vcmask 154624
  %v23 = vsel %vm21, %v17, 0
  %vm25 = vcmask 1042432
  %v27 = vsel %vm25, %v20, 0
  %29 = vmatprep.subr.mxu0 0.0
  %30 = vmatpush1.msra.mxu0 0.0
  %31 = vmatprep.subr.mxu0 0.0
  %32 = vmatpush1.msra.mxu0 0.0
  %33 = vmatprep.subr.mxu0 0.0
  %34 = vmatpush1.msra.mxu0 0.0
  %35 = vmatprep.subr.mxu0 0.0
  %36 = vmatpush1.msra.mxu0 0.0
  %37 = vmatprep.subr.mxu0 0.0
  %38 = vmatpush1.msra.mxu0 0.0
  %39 = vmatprep.subr.mxu0 0.0
  %40 = vmatpush1.msra.mxu0 0.0
  %41 = vmatprep.subr.mxu0 0.0
  %42 = vmatpush1.msra.mxu0 0.0
  %43 = vmatprep.subr.mxu0 0.0
  %44 = vmatpush1.msra.mxu0 0.0
  %45 = vmatprep.subr.mxu0 0.0
  %46 = vmatpush1.msra.mxu0 0.0
  %47 = vmatprep.subr.mxu0 0.0
  %48 = vmatpush1.msra.mxu0 0.0
  %49 = vmatprep.subr.mxu0 0.0
  %50 = vmatpush1.msra.mxu0 0.0
  %51 = vmatprep.subr.mxu0 0.0
  %52 = vmatpush1.msra.mxu0 0.0
  %53 = vmatprep.subr.mxu0 0.0
  %54 = vmatpush1.msra.mxu0 0.0
  %55 = vmatprep.subr.mxu0 0.0
  %56 = vmatpush1.msra.mxu0 %v27
  %57 = vmatprep.subr.mxu0 0.0
  %58 = vmatpush1.msra.mxu0 %v19
  %59 = vmatprep.subr.mxu0 0.0
  %60 = vmatpush1.msra.mxu0 %v18
  %61 = vmatprep.subr.mxu0 0.0
  %62 = vmatpush2.msra.mxu0 0.0
  %63 = vmatprep.subr.mxu0 0.0
  %64 = vmatpush2.msra.mxu0 0.0
  %65 = vmatprep.subr.mxu0 0.0
  %66 = vmatpush2.msra.mxu0 0.0
  %67 = vmatprep.subr.mxu0 0.0
  %68 = vmatpush2.msra.mxu0 0.0
  %69 = vmatprep.subr.mxu0 0.0
  %70 = vmatpush2.msra.mxu0 0.0
  %71 = vmatprep.subr.mxu0 0.0
  %72 = vmatpush2.msra.mxu0 0.0
  %73 = vmatprep.subr.mxu0 0.0
  %74 = vmatpush2.msra.mxu0 0.0
  %75 = vmatprep.subr.mxu0 0.0
  %76 = vmatpush2.msra.mxu0 0.0
  %77 = vmatprep.subr.mxu0 0.0
  %78 = vmatpush2.msra.mxu0 0.0
  %79 = vmatprep.subr.mxu0 0.0
  %80 = vmatpush2.msra.mxu0 0.0
  %81 = vmatprep.subr.mxu0 0.0
  %82 = vmatpush2.msra.mxu0 0.0
  %83 = vmatprep.subr.mxu0 0.0
  %84 = vmatpush2.msra.mxu0 0.0
  %85 = vmatprep.subr.mxu0 0.0
  %86 = vmatpush2.msra.mxu0 0.0
  %87 = vmatprep.subr.mxu0 0.0
  %88 = vmatpush2.msra.mxu0 0.0
  %89 = vmatprep.subr.mxu0 0.0
  %90 = vmatpush2.msra.mxu0 0.0
  %91 = vmatprep.subr.mxu0 0.0
  %92 = vmatpush2.msra.mxu0 0.0
  %93 = vmatprep.mubr.f32.mxu0 0.0
  %94 = vmatmul.mubr.f32.gmra.mxu0 %v23
  %v95 = vpop.f32.mrf.mxu0
  %v96 = vadd.f32 0.0, %v95
  %v97 = vpop.f32.mrf.mxu0
  %98 = vdwg.mxu0
  %v99 = vtanh.pop %v96
  %v100 = vld [vmem:[%s2] sm:$0xff]
  %v101 = vld [vmem:[%s2 + $0x8] sm:$0xff]
  %v102 = vld [vmem:[%s2 + $0x10] sm:$0xff]
  %v103 = vld [vmem:[%s2 + $0x18] sm:$0xff]
  %v104 = vld [vmem:[%s2 + $0x20] sm:$0x1]
  %v105 = vlaneseq
  %v106 = vshrl.u32 %v105, 7
  %v107 = vsub.s32 0, %v106
  %v108 = vrot.slane %v104, %v107
  %vm109 = vcmask 261120
  %v111 = vsel %vm109, %v99, 0
  %113 = vmatprep.subr.mxu0 0.0
  %114 = vmatpush1.msra.mxu0 0.0
  %115 = vmatprep.subr.mxu0 0.0
  %116 = vmatpush1.msra.mxu0 0.0
  %117 = vmatprep.subr.mxu0 0.0
  %118 = vmatpush1.msra.mxu0 0.0
  %119 = vmatprep.subr.mxu0 0.0
  %120 = vmatpush1.msra.mxu0 0.0
  %121 = vmatprep.subr.mxu0 0.0
  %122 = vmatpush1.msra.mxu0 0.0
  %123 = vmatprep.subr.mxu0 0.0
  %124 = vmatpush1.msra.mxu0 0.0
  %125 = vmatprep.subr.mxu0 0.0
  %126 = vmatpush1.msra.mxu0 0.0
  %127 = vmatprep.subr.mxu0 0.0
  %128 = vmatpush1.msra.mxu0 0.0
  %129 = vmatprep.subr.mxu0 0.0
  %130 = vmatpush1.msra.mxu0 0.0
  %131 = vmatprep.subr.mxu0 0.0
  %132 = vmatpush1.msra.mxu0 0.0
  %133 = vmatprep.subr.mxu0 0.0
  %134 = vmatpush1.msra.mxu0 0.0
  %135 = vmatprep.subr.mxu0 0.0
  %136 = vmatpush1.msra.mxu0 0.0
  %137 = vmatprep.subr.mxu0 0.0
  %138 = vmatpush1.msra.mxu0 %v103
  %139 = vmatprep.subr.mxu0 0.0
  %140 = vmatpush1.msra.mxu0 %v102
  %141 = vmatprep.subr.mxu0 0.0
  %142 = vmatpush1.msra.mxu0 %v101
  %143 = vmatprep.subr.mxu0 0.0
  %144 = vmatpush1.msra.mxu0 %v100
  %145 = vmatprep.subr.mxu0 0.0
  %146 = vmatpush2.msra.mxu0 0.0
  %147 = vmatprep.subr.mxu0 0.0
  %148 = vmatpush2.msra.mxu0 0.0
  %149 = vmatprep.subr.mxu0 0.0
  %150 = vmatpush2.msra.mxu0 0.0
  %151 = vmatprep.subr.mxu0 0.0
  %152 = vmatpush2.msra.mxu0 0.0
  %153 = vmatprep.subr.mxu0 0.0
  %154 = vmatpush2.msra.mxu0 0.0
  %155 = vmatprep.subr.mxu0 0.0
  %156 = vmatpush2.msra.mxu0 0.0
  %157 = vmatprep.subr.mxu0 0.0
  %158 = vmatpush2.msra.mxu0 0.0
  %159 = vmatprep.subr.mxu0 0.0
  %160 = vmatpush2.msra.mxu0 0.0
  %161 = vmatprep.subr.mxu0 0.0
  %162 = vmatpush2.msra.mxu0 0.0
  %163 = vmatprep.subr.mxu0 0.0
  %164 = vmatpush2.msra.mxu0 0.0
  %165 = vmatprep.subr.mxu0 0.0
  %166 = vmatpush2.msra.mxu0 0.0
  %167 = vmatprep.subr.mxu0 0.0
  %168 = vmatpush2.msra.mxu0 0.0
  %169 = vmatprep.subr.mxu0 0.0
  %170 = vmatpush2.msra.mxu0 0.0
  %171 = vmatprep.subr.mxu0 0.0
  %172 = vmatpush2.msra.mxu0 0.0
  %173 = vmatprep.subr.mxu0 0.0
  %174 = vmatpush2.msra.mxu0 0.0
  %175 = vmatprep.subr.mxu0 0.0
  %176 = vmatpush2.msra.mxu0 0.0
  %177 = vmatprep.mubr.f32.mxu0 0.0
  %178 = vmatmul.mubr.f32.gmra.mxu0 %v111
  %v179 = vpop.f32.mrf.mxu0
  %v180 = vadd.f32 %v108, %v179
  %v181 = vpop.f32.mrf.mxu0
  %182 = vdwg.mxu0
  %v183 = vlaneseq
  %v184 = vand.u32 %v183, 127
  %vm185 = vcmp.lt.s32.totalorder %v184, 4
  %v186 = vld [vmem:[%s3] sm:$0x1]
  %v188 = vlaneseq
  %v189 = vshrl.u32 %v188, 7
  %v190 = vsub.s32 0, %v189
  %v191 = vrot.slane %v186, %v190
  %v193 = vsub.f32 %v180, %v191
  %v194 = vsel %vm185, %v193, 0.0
  %v195 = vmul.f32 %v186, 0.9
  %vm196 = vcmask 64512
  %v197 = vsel %vm196, %v194, 0.0
  %v198 = vrot.slane %v197, 4
  %v199 = vadd.f32 %v197, %v198
  %v200 = vrot.slane %v199, 2
  %v201 = vadd.f32 %v199, %v200
  %v202 = vrot.slane %v201, 1
  %v203 = vadd.f32 %v201, %v202
  %v204 = vrcp.pop 8.0
  %v205 = vmul.f32 %v203, %v204
  %v206 = vmul.f32 %v205, 0.1
  %v207 = vadd.f32 %v195, %v206
  %v209 = vlaneseq
  %v210 = vshrl.u32 %v209, 7
  %v211 = vsub.s32 0, %v210
  %v212 = vrot.slane %v207, %v211
  %v214 = vsub.f32 %v180, %v212
  %215 = vst.msk [vmem:[%s4] sm:$0xff] %vm196, %v214
  %vm216 = vcmask 57344
  %217 = vst.msk [vmem:[%s4 + $0x8] sm:$0x1] %vm216, %v207
  // Predicated region
  $region18: #{tpu_custom_call.1} parent=0 // pred_check
    _
  $region19: #{tpu_custom_call.1} parent=0 // pred_check_branch
    %219 = sbr.rel (0) target = $region21
  $region20: #{tpu_custom_call.1} parent=0 // pred_region
    _
  $region21: #{tpu_custom_call.1} parent=0 // pred_fallthru
    _
  // Predicated region
  $region22: #{tpu_custom_call.1} parent=0 // pred_check
    _
  $region23: #{tpu_custom_call.1} parent=0 // pred_check_branch
    %221 = sbr.rel (0) target = $region25
  $region24: #{tpu_custom_call.1} parent=0 // pred_region
    _
  $region25: #{tpu_custom_call.1} parent=0 // pred_fallthru
    _

</llo_original>
